<compile_context>
chip_gen: v7x
topology: tpu7x:2x2x1
jax: 0.10.0
libtpu: 0.0.40
codegen_flags: <defaults>
</compile_context>

<pallas_src>
import functools

import jax
import jax.numpy as jnp
from jax.experimental import pallas as pl
from jax.experimental.pallas import tpu as pltpu

EPS = 1e-5  # nn.BatchNorm2d default eps


def _conv_bn_relu_kernel(xk_ref, bmat_ref, g_ref, gt_ref, gb_ref, o_ref, *, N, H, W):
    # xk_ref  : (N*H, Kp)        bf16  three H-shifted, (kw,ci)-folded rows, zero-padded K
    # bmat_ref: (Kp, W*C_out)    bf16  kh-stacked block-banded conv weights (zero pad rows)
    # g_ref   : (W*C_out, C_out) f32   one-hot lane -> channel grouping matrix
    # gt_ref  : (C_out, W*C_out) f32   channel -> lane broadcast matrix (g^T)
    # gb_ref  : (2, C_out)       f32   row 0 = gamma, row 1 = beta
    # o_ref   : (N*H, W*C_out)   f32   lane-dense output
    #
    # 3x3 conv == ONE MXU matmul: kh, kw and ci are all folded into the K axis.
    acc = jnp.dot(xk_ref[...], bmat_ref[...], preferred_element_type=jnp.float32)

    # BatchNorm2d (training-mode): batch stats over (N, H, W) per channel, biased var.
    # Both per-channel reductions share a single MXU round trip on the serial BN tail.
    inv_cnt = 1.0 / float(N * H * W)
    row_stats = jnp.concatenate(
        [jnp.sum(acc, axis=0, keepdims=True),
         jnp.sum(acc * acc, axis=0, keepdims=True)], axis=0)              # (2, W*C_out)
    stats = jnp.dot(row_stats, g_ref[...], preferred_element_type=jnp.float32)  # (2, C)
    mean = stats[0:1, :] * inv_cnt
    # NOTE: E[x^2] - E[x]^2 form (one pass); adequate at these tolerances/magnitudes.
    var = stats[1:2, :] * inv_cnt - mean * mean
    scale = gb_ref[0:1, :] * jax.lax.rsqrt(var + EPS)                     # (1, C_out)
    shift = gb_ref[1:2, :] - mean * scale                                 # (1, C_out)
    # Broadcast per-channel scale/shift back onto the (w, c) lane layout with ONE matmul.
    ss = jnp.concatenate([scale, shift], axis=0)                          # (2, C_out)
    ss_l = jnp.dot(ss, gt_ref[...], preferred_element_type=jnp.float32)   # (2, W*C_out)

    y = acc * ss_l[0:1, :] + ss_l[1:2, :]
    o_ref[...] = jnp.maximum(y, 0.0)                                      # ReLU


def _banded_weight(w_oihw, W):
    """Torch (C_out, C_in, 3, 3) weight -> (3*(W+2)*C_in, W*C_out) kh-stacked banded matrix.

    B[kh*Wp*C_in + wp*C_in + ci, w*C_out + co] = w[co, ci, kh, wp-w] if 0 <= wp-w <= 2 else 0,
    so (concatenated shifted input row) @ B contracts kh, kw and ci in one matmul.
    """
    C_out, C_in, _, _ = w_oihw.shape
    Wp = W + 2
    wk = jnp.transpose(w_oihw, (2, 3, 1, 0)).astype(jnp.float32)          # (kh, kw, ci, co)
    kw_idx = jnp.arange(Wp)[:, None] - jnp.arange(W)[None, :]             # (Wp, W) = wp - w
    valid = ((kw_idx >= 0) & (kw_idx <= 2)).astype(jnp.float32)
    blocks = wk[:, jnp.clip(kw_idx, 0, 2)]                                # (3, Wp, W, C_in, C_out)
    blocks = blocks * valid[None, :, :, None, None]
    b3 = jnp.transpose(blocks, (0, 1, 3, 2, 4)).reshape(3, Wp * C_in, W * C_out)
    return b3.reshape(3 * Wp * C_in, W * C_out)                           # kh folded into K


@jax.jit
def single_conv_forward(x_nchw, w_oihw, b, gamma, beta):
    """single_conv.forward: Conv2d(3x3, pad 1, bias) -> BatchNorm2d -> ReLU (NCHW in/out)."""
    N, C_in, H, W = x_nchw.shape
    C_out = w_oihw.shape[0]
    Hp, Wp = H + 2, W + 2
    del b  # per-channel constant, exactly cancelled by training-mode BN mean subtraction

    # Layout plumbing (wrapper side, once): NCHW -> NHWC, zero-pad H/W by 1, fold
    # (w, ci) onto the lane axis, concatenate the three H-shifted rows so kh is folded
    # into the matmul K dimension, then pad K to a lane-aligned width.
    # TODO(synk): at production sizes keep the model NHWC end-to-end so these
    # transposes / pads / re-transposes don't cost extra HBM round trips.
    x = jnp.transpose(x_nchw, (0, 2, 3, 1)).astype(jnp.float32)
    xp = jnp.pad(x, ((0, 0), (1, 1), (1, 1), (0, 0))).reshape(N, Hp, Wp * C_in)
    xk = jnp.concatenate([xp[:, 0:H], xp[:, 1:H + 1], xp[:, 2:H + 2]], axis=-1)
    xk = xk.reshape(N * H, 3 * Wp * C_in)

    K_raw = 3 * Wp * C_in
    Kp = ((K_raw + 127) // 128) * 128                                     # 216 -> 256 here
    bmat = _banded_weight(w_oihw, W)
    xk = jnp.pad(xk, ((0, 0), (0, Kp - K_raw))).astype(jnp.bfloat16)
    bmat = jnp.pad(bmat, ((0, Kp - K_raw), (0, 0))).astype(jnp.bfloat16)

    gmat = jnp.tile(jnp.eye(C_out, dtype=jnp.float32), (W, 1))            # (W*C_out, C_out)
    gmat_t = gmat.T                                                       # (C_out, W*C_out)
    gb = jnp.stack([gamma, beta]).astype(jnp.float32)                     # (2, C_out)

    kernel = functools.partial(_conv_bn_relu_kernel, N=N, H=H, W=W)
    out2d = pl.pallas_call(
        kernel,
        out_shape=jax.ShapeDtypeStruct((N * H, W * C_out), jnp.float32),
        # Single grid step: BN needs whole-batch statistics and the working set is tiny
        # (<1 MiB), so one VMEM-resident block amortizes all per-step overhead.
        # TODO(synk): for larger N*H / W*C, grid over N*H with resident weights, partial
        # (s1, s2) scratch accumulation + pl.when finalize, and mark the axis "parallel"
        # so v7x's second TensorCore is used and DMA/compute pipelining is restored.
        grid=(1,),
        in_specs=[
            pl.BlockSpec((N * H, Kp), lambda i: (0, 0)),
            pl.BlockSpec((Kp, W * C_out), lambda i: (0, 0)),
            pl.BlockSpec((W * C_out, C_out), lambda i: (0, 0)),
            pl.BlockSpec((C_out, W * C_out), lambda i: (0, 0)),
            pl.BlockSpec((2, C_out), lambda i: (0, 0)),
        ],
        out_specs=pl.BlockSpec((N * H, W * C_out), lambda i: (0, 0)),
        compiler_params=pltpu.CompilerParams(
            dimension_semantics=("arbitrary",),
            vmem_limit_bytes=32 * 1024 * 1024),
    )(xk, bmat, gmat, gmat_t, gb)

    # (N*H, W*C_out) -> (N, H, W, C_out) -> NCHW
    return jnp.transpose(out2d.reshape(N, H, W, C_out), (0, 3, 1, 2))


# ---------------------- pure-JAX reference (for verification) ----------------------
def single_conv_ref(x, w, b, gamma, beta):
    y = jax.lax.conv_general_dilated(
        x, w, window_strides=(1, 1), padding=((1, 1), (1, 1)),
        dimension_numbers=("NCHW", "OIHW", "NCHW"))
    y = y + b.reshape(1, -1, 1, 1)
    mean = jnp.mean(y, axis=(0, 2, 3), keepdims=True)
    var = jnp.mean((y - mean) ** 2, axis=(0, 2, 3), keepdims=True)
    y = (y - mean) * jax.lax.rsqrt(var + EPS)
    y = y * gamma.reshape(1, -1, 1, 1) + beta.reshape(1, -1, 1, 1)
    return jnp.maximum(y, 0.0)


if __name__ == "__main__":
    key = jax.random.PRNGKey(0)
    N, C_in, C_out, H, W = 2, 4, 8, 16, 16
    kx, kw_, kb, kg, kbt = jax.random.split(key, 5)

    # PyTorch-layout tensors: input NCHW, Conv2d weight (C_out, C_in, 3, 3).
    x = jax.random.normal(kx, (N, C_in, H, W), jnp.float32)
    w = 0.1 * jax.random.normal(kw_, (C_out, C_in, 3, 3), jnp.float32)
    b = 0.05 * jax.random.normal(kb, (C_out,), jnp.float32)
    gamma = 1.0 + 0.1 * jax.random.normal(kg, (C_out,), jnp.float32)
    beta = 0.1 * jax.random.normal(kbt, (C_out,), jnp.float32)

    out = single_conv_forward(x, w, b, gamma, beta)
    out = jax.block_until_ready(out)

    ref = single_conv_ref(x, w, b, gamma, beta)
    assert out.shape == (N, C_out, H, W)
    max_err = float(jnp.max(jnp.abs(out - ref)))
    # bf16 MXU operands (f32 accumulation): tolerance sized for bf16 input rounding.
    assert jnp.allclose(out, ref, atol=2e-2, rtol=2e-2), f"max_err={max_err}"

    print("KERNEL_OK")
</pallas_src>

<mosaic_0001>
module attributes {stable_mosaic.version = 11 : i64} {
  func.func @_conv_bn_relu_kernel(%arg0: i32, %arg1: memref<32x256xbf16, #tpu.memory_space<vmem>>, %arg2: memref<256x128xbf16, #tpu.memory_space<vmem>>, %arg3: memref<128x8xf32, #tpu.memory_space<vmem>>, %arg4: memref<8x128xf32, #tpu.memory_space<vmem>>, %arg5: memref<2x8xf32, #tpu.memory_space<vmem>>, %arg6: memref<32x128xf32, #tpu.memory_space<vmem>>) attributes {dimension_semantics = [#tpu.dimension_semantics<arbitrary>], iteration_bounds = array<i64: 1>, scalar_prefetch = 0 : i64, scratch_operands = 0 : i64, tpu.core_type = #tpu.core_type<tc>, window_params = [{pipeline_mode = #tpu.pipeline_mode<synchronous>, transform_indices = @transform_0, window_bounds = array<i64: 32, 256>}, {pipeline_mode = #tpu.pipeline_mode<synchronous>, transform_indices = @transform_1, window_bounds = array<i64: 256, 128>}, {pipeline_mode = #tpu.pipeline_mode<synchronous>, transform_indices = @transform_2, window_bounds = array<i64: 128, 8>}, {pipeline_mode = #tpu.pipeline_mode<synchronous>, transform_indices = @transform_3, window_bounds = array<i64: 8, 128>}, {pipeline_mode = #tpu.pipeline_mode<synchronous>, transform_indices = @transform_4, window_bounds = array<i64: 2, 8>}, {pipeline_mode = #tpu.pipeline_mode<synchronous>, transform_indices = @transform_5, window_bounds = array<i64: 32, 128>}]} {
    %c0 = arith.constant 0 : index
    %c0_0 = arith.constant 0 : index
    %0 = vector.load %arg1[%c0, %c0_0] : memref<32x256xbf16, #tpu.memory_space<vmem>>, vector<32x256xbf16>
    %c0_1 = arith.constant 0 : index
    %c0_2 = arith.constant 0 : index
    %1 = vector.load %arg2[%c0_1, %c0_2] : memref<256x128xbf16, #tpu.memory_space<vmem>>, vector<256x128xbf16>
    %cst = arith.constant dense<0.000000e+00> : vector<32x128xf32>
    %2 = tpu.matmul %0, %1, %cst {dimension_numbers = #tpu.dot_dimension_numbers<[1], [0], [0], [1], [0, 0, 1, 1], [], []>} : vector<32x256xbf16>, vector<256x128xbf16>, vector<32x128xf32> -> vector<32x128xf32>
    %cst_3 = arith.constant dense<0.000000e+00> : vector<128xf32>
    %3 = vector.multi_reduction <add>, %2, %cst_3 [0] : vector<32x128xf32> to vector<128xf32>
    %4 = vector.shape_cast %3 : vector<128xf32> to vector<1x128xf32>
    %5 = arith.mulf %2, %2 : vector<32x128xf32>
    %cst_4 = arith.constant dense<0.000000e+00> : vector<128xf32>
    %6 = vector.multi_reduction <add>, %5, %cst_4 [0] : vector<32x128xf32> to vector<128xf32>
    %7 = vector.shape_cast %6 : vector<128xf32> to vector<1x128xf32>
    %8 = tpu.concatenate %4, %7 in 0 : vector<1x128xf32>, vector<1x128xf32> -> vector<2x128xf32>
    %c0_5 = arith.constant 0 : index
    %c0_6 = arith.constant 0 : index
    %9 = vector.load %arg3[%c0_5, %c0_6] : memref<128x8xf32, #tpu.memory_space<vmem>>, vector<128x8xf32>
    %cst_7 = arith.constant dense<0.000000e+00> : vector<2x8xf32>
    %10 = tpu.matmul %8, %9, %cst_7 {dimension_numbers = #tpu.dot_dimension_numbers<[1], [0], [0], [1], [0, 0, 1, 1], [], []>} : vector<2x128xf32>, vector<128x8xf32>, vector<2x8xf32> -> vector<2x8xf32>
    %11 = vector.extract_strided_slice %10 {offsets = [0, 0], sizes = [1, 8], strides = [1, 1]} : vector<2x8xf32> to vector<1x8xf32>
    %cst_8 = arith.constant 0.001953125 : f32
    %12 = vector.broadcast %cst_8 : f32 to vector<1x8xf32>
    %13 = arith.mulf %11, %12 : vector<1x8xf32>
    %14 = vector.extract_strided_slice %10 {offsets = [1, 0], sizes = [1, 8], strides = [1, 1]} : vector<2x8xf32> to vector<1x8xf32>
    %cst_9 = arith.constant 0.001953125 : f32
    %15 = vector.broadcast %cst_9 : f32 to vector<1x8xf32>
    %16 = arith.mulf %14, %15 : vector<1x8xf32>
    %17 = arith.mulf %13, %13 : vector<1x8xf32>
    %18 = arith.subf %16, %17 : vector<1x8xf32>
    %c0_10 = arith.constant 0 : index
    %c0_11 = arith.constant 0 : index
    %19 = vector.load %arg5[%c0_10, %c0_11] : memref<2x8xf32, #tpu.memory_space<vmem>>, vector<1x8xf32>
    %cst_12 = arith.constant 9.99999974E-6 : f32
    %20 = vector.broadcast %cst_12 : f32 to vector<1x8xf32>
    %21 = arith.addf %18, %20 : vector<1x8xf32>
    %22 = math.rsqrt %21 : vector<1x8xf32>
    %23 = arith.mulf %19, %22 : vector<1x8xf32>
    %c1 = arith.constant 1 : index
    %c0_13 = arith.constant 0 : index
    %24 = vector.load %arg5[%c1, %c0_13] : memref<2x8xf32, #tpu.memory_space<vmem>>, vector<1x8xf32>
    %25 = arith.mulf %13, %23 : vector<1x8xf32>
    %26 = arith.subf %24, %25 : vector<1x8xf32>
    %27 = tpu.concatenate %23, %26 in 0 : vector<1x8xf32>, vector<1x8xf32> -> vector<2x8xf32>
    %c0_14 = arith.constant 0 : index
    %c0_15 = arith.constant 0 : index
    %28 = vector.load %arg4[%c0_14, %c0_15] : memref<8x128xf32, #tpu.memory_space<vmem>>, vector<8x128xf32>
    %cst_16 = arith.constant dense<0.000000e+00> : vector<2x128xf32>
    %29 = tpu.matmul %27, %28, %cst_16 {dimension_numbers = #tpu.dot_dimension_numbers<[1], [0], [0], [1], [0, 0, 1, 1], [], []>} : vector<2x8xf32>, vector<8x128xf32>, vector<2x128xf32> -> vector<2x128xf32>
    %30 = vector.extract_strided_slice %29 {offsets = [0, 0], sizes = [1, 128], strides = [1, 1]} : vector<2x128xf32> to vector<1x128xf32>
    %31 = vector.broadcast %30 : vector<1x128xf32> to vector<32x128xf32>
    %32 = arith.mulf %2, %31 : vector<32x128xf32>
    %33 = vector.extract_strided_slice %29 {offsets = [1, 0], sizes = [1, 128], strides = [1, 1]} : vector<2x128xf32> to vector<1x128xf32>
    %34 = vector.broadcast %33 : vector<1x128xf32> to vector<32x128xf32>
    %35 = arith.addf %32, %34 : vector<32x128xf32>
    %cst_17 = arith.constant 0.000000e+00 : f32
    %36 = vector.broadcast %cst_17 : f32 to vector<32x128xf32>
    %37 = arith.maximumf %35, %36 : vector<32x128xf32>
    %c0_18 = arith.constant 0 : index
    %c0_19 = arith.constant 0 : index
    %38 = vector.load %arg6[%c0_18, %c0_19] : memref<32x128xf32, #tpu.memory_space<vmem>>, vector<32x128xf32>
    tpu.vector_store %arg6[%c0_18, %c0_19], %37 {strides = array<i32>} : memref<32x128xf32, #tpu.memory_space<vmem>>, vector<32x128xf32>,
    return
  }
  func.func @transform_0(%arg0: i32) -> (i32, i32) {
    %c0_i32 = arith.constant 0 : i32
    %c0_i32_0 = arith.constant 0 : i32
    %c0_i32_1 = arith.constant 0 : i32
    return %c0_i32, %c0_i32_0 : i32, i32
  }
  func.func @transform_1(%arg0: i32) -> (i32, i32) {
    %c0_i32 = arith.constant 0 : i32
    %c0_i32_0 = arith.constant 0 : i32
    %c0_i32_1 = arith.constant 0 : i32
    return %c0_i32, %c0_i32_0 : i32, i32
  }
  func.func @transform_2(%arg0: i32) -> (i32, i32) {
    %c0_i32 = arith.constant 0 : i32
    %c0_i32_0 = arith.constant 0 : i32
    %c0_i32_1 = arith.constant 0 : i32
    return %c0_i32, %c0_i32_0 : i32, i32
  }
  func.func @transform_3(%arg0: i32) -> (i32, i32) {
    %c0_i32 = arith.constant 0 : i32
    %c0_i32_0 = arith.constant 0 : i32
    %c0_i32_1 = arith.constant 0 : i32
    return %c0_i32, %c0_i32_0 : i32, i32
  }
  func.func @transform_4(%arg0: i32) -> (i32, i32) {
    %c0_i32 = arith.constant 0 : i32
    %c0_i32_0 = arith.constant 0 : i32
    %c0_i32_1 = arith.constant 0 : i32
    return %c0_i32, %c0_i32_0 : i32, i32
  }
  func.func @transform_5(%arg0: i32) -> (i32, i32) {
    %c0_i32 = arith.constant 0 : i32
    %c0_i32_0 = arith.constant 0 : i32
    %c0_i32_1 = arith.constant 0 : i32
    return %c0_i32, %c0_i32_0 : i32, i32
  }
}

</mosaic_0001>

<llo_original>
// kernel: tile.9
$region0: #{tile.9}
  %s0 = inlined_call_operand.vmem [shape: f32[16,8,8], index: 0, kind: input, shape index: {}]
  %s1 = inlined_call_operand.vmem [shape: f32[128,8], index: 1, kind: output, shape index: {}]
  %s2 = smov 3
  %v3 = vld [vmem:[%s0] ss:$16 sm:%s2]
  %s4 = smov 12
  %v5 = vld [vmem:[%s0] ss:$16 sm:%s4]
  %vm6 = vcmask 1043458
  %v7 = vsel %vm6, %v5, %v3
  %s8 = smov 48
  %v9 = vld [vmem:[%s0] ss:$16 sm:%s8]
  %vm10 = vcmask 1045508
  %v11 = vsel %vm10, %v9, %v7
  %s12 = smov 192
  %v13 = vld [vmem:[%s0] ss:$16 sm:%s12]
  %vm14 = vcmask 1047558
  %v15 = vsel %vm14, %v13, %v11
  %vm16 = vcmask 64512
  %17 = vst.msk [vmem:[%s1] sm:$0xff] %vm16, %v15
  %s18 = scalar_lea.vmem %s0, 15
  %s19 = smov 3
  %v20 = vld [vmem:[%s18] ss:$16 sm:%s19]
  %s21 = scalar_lea.vmem %s0, 15
  %s22 = smov 12
  %v23 = vld [vmem:[%s21] ss:$16 sm:%s22]
  %vm24 = vcmask 1043458
  %v25 = vsel %vm24, %v23, %v20
  %s26 = scalar_lea.vmem %s0, 15
  %s27 = smov 48
  %v28 = vld [vmem:[%s26] ss:$16 sm:%s27]
  %vm29 = vcmask 1045508
  %v30 = vsel %vm29, %v28, %v25
  %s31 = scalar_lea.vmem %s0, 15
  %s32 = smov 192
  %v33 = vld [vmem:[%s31] ss:$16 sm:%s32]
  %vm34 = vcmask 1047558
  %v35 = vsel %vm34, %v33, %v30
  %36 = vrot.lane.b32.xlu0 %v35, 120
  %v37 = vpop.permute.xlu0 %36
  %vm38 = vcmask 1048512
  %39 = vst.msk [vmem:[%s1] sm:$0xff] %vm38, %v37
  %s40 = scalar_lea.vmem %s0, 14
  %s41 = smov 3
  %v42 = vld [vmem:[%s40] ss:$16 sm:%s41]
  %s43 = scalar_lea.vmem %s0, 14
  %s44 = smov 12
  %v45 = vld [vmem:[%s43] ss:$16 sm:%s44]
  %vm46 = vcmask 1043458
  %v47 = vsel %vm46, %v45, %v42
  %s48 = scalar_lea.vmem %s0, 14
  %s49 = smov 48
  %v50 = vld [vmem:[%s48] ss:$16 sm:%s49]
  %vm51 = vcmask 1045508
  %v52 = vsel %vm51, %v50, %v47
  %s53 = scalar_lea.vmem %s0, 14
  %s54 = smov 192
  %v55 = vld [vmem:[%s53] ss:$16 sm:%s54]
  %vm56 = vcmask 1047558
  %v57 = vsel %vm56, %v55, %v52
  %58 = vrot.lane.b32.xlu0 %v57, 112
  %v59 = vpop.permute.xlu0 %58
  %vm60 = vcmask 982912
  %61 = vst.msk [vmem:[%s1] sm:$0xff] %vm60, %v59
  %s62 = scalar_lea.vmem %s0, 13
  %s63 = smov 3
  %v64 = vld [vmem:[%s62] ss:$16 sm:%s63]
  %s65 = scalar_lea.vmem %s0, 13
  %s66 = smov 12
  %v67 = vld [vmem:[%s65] ss:$16 sm:%s66]
  %vm68 = vcmask 1043458
  %v69 = vsel %vm68, %v67, %v64
  %s70 = scalar_lea.vmem %s0, 13
  %s71 = smov 48
  %v72 = vld [vmem:[%s70] ss:$16 sm:%s71]
  %vm73 = vcmask 1045508
  %v74 = vsel %vm73, %v72, %v69
  %s75 = scalar_lea.vmem %s0, 13
  %s76 = smov 192
  %v77 = vld [vmem:[%s75] ss:$16 sm:%s76]
  %vm78 = vcmask 1047558
  %v79 = vsel %vm78, %v77, %v74
  %80 = vrot.lane.b32.xlu0 %v79, 104
  %v81 = vpop.permute.xlu0 %80
  %vm82 = vcmask 917312
  %83 = vst.msk [vmem:[%s1] sm:$0xff] %vm82, %v81
  %s84 = scalar_lea.vmem %s0, 12
  %s85 = smov 3
  %v86 = vld [vmem:[%s84] ss:$16 sm:%s85]
  %s87 = scalar_lea.vmem %s0, 12
  %s88 = smov 12
  %v89 = vld [vmem:[%s87] ss:$16 sm:%s88]
  %vm90 = vcmask 1043458
  %v91 = vsel %vm90, %v89, %v86
  %s92 = scalar_lea.vmem %s0, 12
  %s93 = smov 48
  %v94 = vld [vmem:[%s92] ss:$16 sm:%s93]
  %vm95 = vcmask 1045508
  %v96 = vsel %vm95, %v94, %v91
  %s97 = scalar_lea.vmem %s0, 12
  %s98 = smov 192
  %v99 = vld [vmem:[%s97] ss:$16 sm:%s98]
  %vm100 = vcmask 1047558
  %v101 = vsel %vm100, %v99, %v96
  %102 = vrot.lane.b32.xlu0 %v101, 96
  %v103 = vpop.permute.xlu0 %102
  %vm104 = vcmask 851712
  %105 = vst.msk [vmem:[%s1] sm:$0xff] %vm104, %v103
  %s106 = scalar_lea.vmem %s0, 11
  %s107 = smov 3
  %v108 = vld [vmem:[%s106] ss:$16 sm:%s107]
  %s109 = scalar_lea.vmem %s0, 11
  %s110 = smov 12
  %v111 = vld [vmem:[%s109] ss:$16 sm:%s110]
  %vm112 = vcmask 1043458
  %v113 = vsel %vm112, %v111, %v108
  %s114 = scalar_lea.vmem %s0, 11
  %s115 = smov 48
  %v116 = vld [vmem:[%s114] ss:$16 sm:%s115]
  %vm117 = vcmask 1045508
  %v118 = vsel %vm117, %v116, %v113
  %s119 = scalar_lea.vmem %s0, 11
  %s120 = smov 192
  %v121 = vld [vmem:[%s119] ss:$16 sm:%s120]
  %vm122 = vcmask 1047558
  %v123 = vsel %vm122, %v121, %v118
  %124 = vrot.lane.b32.xlu0 %v123, 88
  %v125 = vpop.permute.xlu0 %124
  %vm126 = vcmask 786112
  %127 = vst.msk [vmem:[%s1] sm:$0xff] %vm126, %v125
  %s128 = scalar_lea.vmem %s0, 10
  %s129 = smov 3
  %v130 = vld [vmem:[%s128] ss:$16 sm:%s129]
  %s131 = scalar_lea.vmem %s0, 10
  %s132 = smov 12
  %v133 = vld [vmem:[%s131] ss:$16 sm:%s132]
  %vm134 = vcmask 1043458
  %v135 = vsel %vm134, %v133, %v130
  %s136 = scalar_lea.vmem %s0, 10
  %s137 = smov 48
  %v138 = vld [vmem:[%s136] ss:$16 sm:%s137]
  %vm139 = vcmask 1045508
  %v140 = vsel %vm139, %v138, %v135
  %s141 = scalar_lea.vmem %s0, 10
  %s142 = smov 192
  %v143 = vld [vmem:[%s141] ss:$16 sm:%s142]
  %vm144 = vcmask 1047558
  %v145 = vsel %vm144, %v143, %v140
  %146 = vrot.lane.b32.xlu0 %v145, 80
  %v147 = vpop.permute.xlu0 %146
  %vm148 = vcmask 720512
  %149 = vst.msk [vmem:[%s1] sm:$0xff] %vm148, %v147
  %s150 = scalar_lea.vmem %s0, 9
  %s151 = smov 3
  %v152 = vld [vmem:[%s150] ss:$16 sm:%s151]
  %s153 = scalar_lea.vmem %s0, 9
  %s154 = smov 12
  %v155 = vld [vmem:[%s153] ss:$16 sm:%s154]
  %vm156 = vcmask 1043458
  %v157 = vsel %vm156, %v155, %v152
  %s158 = scalar_lea.vmem %s0, 9
  %s159 = smov 48
  %v160 = vld [vmem:[%s158] ss:$16 sm:%s159]
  %vm161 = vcmask 1045508
  %v162 = vsel %vm161, %v160, %v157
  %s163 = scalar_lea.vmem %s0, 9
  %s164 = smov 192
  %v165 = vld [vmem:[%s163] ss:$16 sm:%s164]
  %vm166 = vcmask 1047558
  %v167 = vsel %vm166, %v165, %v162
  %168 = vrot.lane.b32.xlu0 %v167, 72
  %v169 = vpop.permute.xlu0 %168
  %vm170 = vcmask 654912
  %171 = vst.msk [vmem:[%s1] sm:$0xff] %vm170, %v169
  %s172 = scalar_lea.vmem %s0, 8
  %s173 = smov 3
  %v174 = vld [vmem:[%s172] ss:$16 sm:%s173]
  %s175 = scalar_lea.vmem %s0, 8
  %s176 = smov 12
  %v177 = vld [vmem:[%s175] ss:$16 sm:%s176]
  %vm178 = vcmask 1043458
  %v179 = vsel %vm178, %v177, %v174
  %s180 = scalar_lea.vmem %s0, 8
  %s181 = smov 48
  %v182 = vld [vmem:[%s180] ss:$16 sm:%s181]
  %vm183 = vcmask 1045508
  %v184 = vsel %vm183, %v182, %v179
  %s185 = scalar_lea.vmem %s0, 8
  %s186 = smov 192
  %v187 = vld [vmem:[%s185] ss:$16 sm:%s186]
  %vm188 = vcmask 1047558
  %v189 = vsel %vm188, %v187, %v184
  %190 = vrot.lane.b32.xlu0 %v189, 64
  %v191 = vpop.permute.xlu0 %190
  %vm192 = vcmask 589312
  %193 = vst.msk [vmem:[%s1] sm:$0xff] %vm192, %v191
  %s194 = scalar_lea.vmem %s0, 7
  %s195 = smov 3
  %v196 = vld [vmem:[%s194] ss:$16 sm:%s195]
  %s197 = scalar_lea.vmem %s0, 7
  %s198 = smov 12
  %v199 = vld [vmem:[%s197] ss:$16 sm:%s198]
  %vm200 = vcmask 1043458
  %v201 = vsel %vm200, %v199, %v196
  %s202 = scalar_lea.vmem %s0, 7
  %s203 = smov 48
  %v204 = vld [vmem:[%s202] ss:$16 sm:%s203]
  %vm205 = vcmask 1045508
  %v206 = vsel %vm205, %v204, %v201
  %s207 = scalar_lea.vmem %s0, 7
  %s208 = smov 192
  %v209 = vld [vmem:[%s207] ss:$16 sm:%s208]
  %vm210 = vcmask 1047558
  %v211 = vsel %vm210, %v209, %v206
  %212 = vrot.lane.b32.xlu0 %v211, 56
  %v213 = vpop.permute.xlu0 %212
  %vm214 = vcmask 523712
  %215 = vst.msk [vmem:[%s1] sm:$0xff] %vm214, %v213
  %s216 = scalar_lea.vmem %s0, 6
  %s217 = smov 3
  %v218 = vld [vmem:[%s216] ss:$16 sm:%s217]
  %s219 = scalar_lea.vmem %s0, 6
  %s220 = smov 12
  %v221 = vld [vmem:[%s219] ss:$16 sm:%s220]
  %vm222 = vcmask 1043458
  %v223 = vsel %vm222, %v221, %v218
  %s224 = scalar_lea.vmem %s0, 6
  %s225 = smov 48
  %v226 = vld [vmem:[%s224] ss:$16 sm:%s225]
  %vm227 = vcmask 1045508
  %v228 = vsel %vm227, %v226, %v223
  %s229 = scalar_lea.vmem %s0, 6
  %s230 = smov 192
  %v231 = vld [vmem:[%s229] ss:$16 sm:%s230]
  %vm232 = vcmask 1047558
  %v233 = vsel %vm232, %v231, %v228
  %234 = vrot.lane.b32.xlu0 %v233, 48
  %v235 = vpop.permute.xlu0 %234
  %vm236 = vcmask 458112
  %237 = vst.msk [vmem:[%s1] sm:$0xff] %vm236, %v235
  %s238 = scalar_lea.vmem %s0, 5
  %s239 = smov 3
  %v240 = vld [vmem:[%s238] ss:$16 sm:%s239]
  %s241 = scalar_lea.vmem %s0, 5
  %s242 = smov 12
  %v243 = vld [vmem:[%s241] ss:$16 sm:%s242]
  %vm244 = vcmask 1043458
  %v245 = vsel %vm244, %v243, %v240
  %s246 = scalar_lea.vmem %s0, 5
  %s247 = smov 48
  %v248 = vld [vmem:[%s246] ss:$16 sm:%s247]
  %vm249 = vcmask 1045508
  %v250 = vsel %vm249, %v248, %v245
  %s251 = scalar_lea.vmem %s0, 5
  %s252 = smov 192
  %v253 = vld [vmem:[%s251] ss:$16 sm:%s252]
  %vm254 = vcmask 1047558
  %v255 = vsel %vm254, %v253, %v250
  %256 = vrot.lane.b32.xlu0 %v255, 40
  %v257 = vpop.permute.xlu0 %256
  %vm258 = vcmask 392512
  %259 = vst.msk [vmem:[%s1] sm:$0xff] %vm258, %v257
  %s260 = scalar_lea.vmem %s0, 4
  %s261 = smov 3
  %v262 = vld [vmem:[%s260] ss:$16 sm:%s261]
  %s263 = scalar_lea.vmem %s0, 4
  %s264 = smov 12
  %v265 = vld [vmem:[%s263] ss:$16 sm:%s264]
  %vm266 = vcmask 1043458
  %v267 = vsel %vm266, %v265, %v262
  %s268 = scalar_lea.vmem %s0, 4
  %s269 = smov 48
  %v270 = vld [vmem:[%s268] ss:$16 sm:%s269]
  %vm271 = vcmask 1045508
  %v272 = vsel %vm271, %v270, %v267
  %s273 = scalar_lea.vmem %s0, 4
  %s274 = smov 192
  %v275 = vld [vmem:[%s273] ss:$16 sm:%s274]
  %vm276 = vcmask 1047558
  %v277 = vsel %vm276, %v275, %v272
  %278 = vrot.lane.b32.xlu0 %v277, 32
  %v279 = vpop.permute.xlu0 %278
  %vm280 = vcmask 326912
  %281 = vst.msk [vmem:[%s1] sm:$0xff] %vm280, %v279
  %s282 = scalar_lea.vmem %s0, 3
  %s283 = smov 3
  %v284 = vld [vmem:[%s282] ss:$16 sm:%s283]
  %s285 = scalar_lea.vmem %s0, 3
  %s286 = smov 12
  %v287 = vld [vmem:[%s285] ss:$16 sm:%s286]
  %vm288 = vcmask 1043458
  %v289 = vsel %vm288, %v287, %v284
  %s290 = scalar_lea.vmem %s0, 3
  %s291 = smov 48
  %v292 = vld [vmem:[%s290] ss:$16 sm:%s291]
  %vm293 = vcmask 1045508
  %v294 = vsel %vm293, %v292, %v289
  %s295 = scalar_lea.vmem %s0, 3
  %s296 = smov 192
  %v297 = vld [vmem:[%s295] ss:$16 sm:%s296]
  %vm298 = vcmask 1047558
  %v299 = vsel %vm298, %v297, %v294
  %300 = vrot.lane.b32.xlu0 %v299, 24
  %v301 = vpop.permute.xlu0 %300
  %vm302 = vcmask 261312
  %303 = vst.msk [vmem:[%s1] sm:$0xff] %vm302, %v301
  %s304 = scalar_lea.vmem %s0, 2
  %s305 = smov 3
  %v306 = vld [vmem:[%s304] ss:$16 sm:%s305]
  %s307 = scalar_lea.vmem %s0, 2
  %s308 = smov 12
  %v309 = vld [vmem:[%s307] ss:$16 sm:%s308]
  %vm310 = vcmask 1043458
  %v311 = vsel %vm310, %v309, %v306
  %s312 = scalar_lea.vmem %s0, 2
  %s313 = smov 48
  %v314 = vld [vmem:[%s312] ss:$16 sm:%s313]
  %vm315 = vcmask 1045508
  %v316 = vsel %vm315, %v314, %v311
  %s317 = scalar_lea.vmem %s0, 2
  %s318 = smov 192
  %v319 = vld [vmem:[%s317] ss:$16 sm:%s318]
  %vm320 = vcmask 1047558
  %v321 = vsel %vm320, %v319, %v316
  %322 = vrot.lane.b32.xlu0 %v321, 16
  %v323 = vpop.permute.xlu0 %322
  %vm324 = vcmask 195712
  %325 = vst.msk [vmem:[%s1] sm:$0xff] %vm324, %v323
  %s326 = scalar_lea.vmem %s0, 1
  %s327 = smov 3
  %v328 = vld [vmem:[%s326] ss:$16 sm:%s327]
  %s329 = scalar_lea.vmem %s0, 1
  %s330 = smov 12
  %v331 = vld [vmem:[%s329] ss:$16 sm:%s330]
  %vm332 = vcmask 1043458
  %v333 = vsel %vm332, %v331, %v328
  %s334 = scalar_lea.vmem %s0, 1
  %s335 = smov 48
  %v336 = vld [vmem:[%s334] ss:$16 sm:%s335]
  %vm337 = vcmask 1045508
  %v338 = vsel %vm337, %v336, %v333
  %s339 = scalar_lea.vmem %s0, 1
  %s340 = smov 192
  %v341 = vld [vmem:[%s339] ss:$16 sm:%s340]
  %vm342 = vcmask 1047558
  %v343 = vsel %vm342, %v341, %v338
  %344 = vrot.lane.b32.xlu0 %v343, 8
  %v345 = vpop.permute.xlu0 %344
  %vm346 = vcmask 130112
  %347 = vst.msk [vmem:[%s1] sm:$0xff] %vm346, %v345

// kernel: single_conv_forward.1
$region0: #{single_conv_forward.1}
  #allocation0 [shape = 'u32[]', space=smem, size = 0x4, offset = 0x4, fixed_abs, tag = 'smem constant byte address 0x4 - core index']
  #allocation1 [shape = 'u32[144,128]{1,0:T(1,128)}', space=vmem, size = 0x12000, scoped, tag = 'internal scratch']
  %s0 = inlined_call_operand.vmem [shape: bf16[32,256], index: 0, kind: input, shape index: {}]
  %s1 = inlined_call_operand.vmem [shape: bf16[256,128], index: 1, kind: input, shape index: {}]
  %s2 = inlined_call_operand.vmem [shape: f32[128,8], index: 2, kind: input, shape index: {}]
  %s3 = inlined_call_operand.vmem [shape: f32[8,128], index: 3, kind: input, shape index: {}]
  %s4 = inlined_call_operand.vmem [shape: f32[2,8], index: 4, kind: input, shape index: {}]
  %s5 = inlined_call_operand.vmem [shape: f32[32,128], index: 5, kind: output, shape index: {}]
  %s6 = sld [smem:[#allocation0]]
  $region30: #{single_conv_forward.1} parent=0
    _
  %s8 = ssub.s32 1, %s6
  %s9 = scalar_select 0, %s8, %s6
  // Predicated region
  $region2: #{single_conv_forward.1} parent=0 // pred_check
    _
  $region3: #{single_conv_forward.1} parent=0 // pred_check_branch
    %11 = sbr.rel (0) target = $region5
  $region4: #{single_conv_forward.1} parent=0 // pred_region
    _
  $region5: #{single_conv_forward.1} parent=0 // pred_fallthru
    _
  // Predicated region
  $region6: #{single_conv_forward.1} parent=0 // pred_check
    _
  $region7: #{single_conv_forward.1} parent=0 // pred_check_branch
    %13 = sbr.rel (0) target = $region9
  $region8: #{single_conv_forward.1} parent=0 // pred_region
    _
  $region9: #{single_conv_forward.1} parent=0 // pred_fallthru
    _
  // Predicated region
  $region10: #{single_conv_forward.1} parent=0 // pred_check
    _
  $region11: #{single_conv_forward.1} parent=0 // pred_check_branch
    %15 = sbr.rel (0) target = $region13
  $region12: #{single_conv_forward.1} parent=0 // pred_region
    _
  $region13: #{single_conv_forward.1} parent=0 // pred_fallthru
    _
  // Predicated region
  $region14: #{single_conv_forward.1} parent=0 // pred_check
    _
  $region15: #{single_conv_forward.1} parent=0 // pred_check_branch
    %17 = sbr.rel (0) target = $region17
  $region16: #{single_conv_forward.1} parent=0 // pred_region
    _
  $region17: #{single_conv_forward.1} parent=0 // pred_fallthru
    _
  // Predicated region
  $region18: #{single_conv_forward.1} parent=0 // pred_check
    _
  $region19: #{single_conv_forward.1} parent=0 // pred_check_branch
    %19 = sbr.rel (0) target = $region21
  $region20: #{single_conv_forward.1} parent=0 // pred_region
    _
  $region21: #{single_conv_forward.1} parent=0 // pred_fallthru
    _
  %v21 = vld [vmem:[%s0] sm:$0xff]
  %v22 = vld [vmem:[%s0 + $0x8] sm:$0xff]
  %v23 = vld [vmem:[%s0 + $0x10] sm:$0xff]
  %v24 = vld [vmem:[%s0 + $0x18] sm:$0xff]
  %v25 = vld [vmem:[%s1] sm:$0xf]
  %v26 = vld [vmem:[%s1 + $0x4] sm:$0xf]
  %v27 = vld [vmem:[%s1 + $0x8] sm:$0xf]
  %v28 = vld [vmem:[%s1 + $0xc] sm:$0xf]
  %v29 = vld [vmem:[%s1 + $0x10] sm:$0xf]
  %v30 = vld [vmem:[%s1 + $0x14] sm:$0xf]
  %v31 = vld [vmem:[%s1 + $0x18] sm:$0xf]
  %v32 = vld [vmem:[%s1 + $0x1c] sm:$0xf]
  %v33 = vld [vmem:[%s1 + $0x20] sm:$0xf]
  %v34 = vld [vmem:[%s1 + $0x24] sm:$0xf]
  %v35 = vld [vmem:[%s1 + $0x28] sm:$0xf]
  %v36 = vld [vmem:[%s1 + $0x2c] sm:$0xf]
  %v37 = vld [vmem:[%s1 + $0x30] sm:$0xf]
  %v38 = vld [vmem:[%s1 + $0x34] sm:$0xf]
  %v39 = vld [vmem:[%s1 + $0x38] sm:$0xf]
  %v40 = vld [vmem:[%s1 + $0x3c] sm:$0xf]
  %v41 = vld [vmem:[%s1 + $0x40] sm:$0xf]
  %v42 = vld [vmem:[%s1 + $0x44] sm:$0xf]
  %v43 = vld [vmem:[%s1 + $0x48] sm:$0xf]
  %v44 = vld [vmem:[%s1 + $0x4c] sm:$0xf]
  %v45 = vld [vmem:[%s1 + $0x50] sm:$0xf]
  %v46 = vld [vmem:[%s1 + $0x54] sm:$0xf]
  %v47 = vld [vmem:[%s1 + $0x58] sm:$0xf]
  %v48 = vld [vmem:[%s1 + $0x5c] sm:$0xf]
  %v49 = vld [vmem:[%s1 + $0x60] sm:$0xf]
  %v50 = vld [vmem:[%s1 + $0x64] sm:$0xf]
  %v51 = vld [vmem:[%s1 + $0x68] sm:$0xf]
  %v52 = vld [vmem:[%s1 + $0x6c] sm:$0xf]
  %v53 = vld [vmem:[%s1 + $0x70] sm:$0xf]
  %v54 = vld [vmem:[%s1 + $0x74] sm:$0xf]
  %v55 = vld [vmem:[%s1 + $0x78] sm:$0xf]
  %v56 = vld [vmem:[%s1 + $0x7c] sm:$0xf]
  %v61 = vunpack.c.l.b16 %v21
  %v62 = vunpack.c.h.b16 %v21
  %v63 = vunpack.c.l.b16 %v22
  %v64 = vunpack.c.h.b16 %v22
  %v65 = vunpack.c.l.b16 %v23
  %v66 = vunpack.c.h.b16 %v23
  %v67 = vunpack.c.l.b16 %v24
  %v68 = vunpack.c.h.b16 %v24
  %v69 = vpack.c.b16 %v63, %v61
  %v70 = vpack.c.b16 %v64, %v62
  %v71 = vpack.c.b16 %v67, %v65
  %v72 = vpack.c.b16 %v68, %v66
  %v109 = vunpack.c.l.b16 %v25
  %v110 = vunpack.c.l.b16 %v26
  %v111 = vunpack.c.l.b16 %v27
  %v112 = vunpack.c.l.b16 %v28
  %v113 = vunpack.c.l.b16 %v29
  %v114 = vunpack.c.l.b16 %v30
  %v115 = vunpack.c.l.b16 %v31
  %v116 = vunpack.c.l.b16 %v32
  %v117 = vunpack.c.l.b16 %v33
  %v118 = vunpack.c.l.b16 %v34
  %v119 = vunpack.c.l.b16 %v35
  %v120 = vunpack.c.l.b16 %v36
  %v121 = vunpack.c.l.b16 %v37
  %v122 = vunpack.c.l.b16 %v38
  %v123 = vunpack.c.l.b16 %v39
  %v124 = vunpack.c.l.b16 %v40
  %v125 = vunpack.c.l.b16 %v41
  %v126 = vunpack.c.l.b16 %v42
  %v127 = vunpack.c.l.b16 %v43
  %v128 = vunpack.c.l.b16 %v44
  %v129 = vunpack.c.l.b16 %v45
  %v130 = vunpack.c.l.b16 %v46
  %v131 = vunpack.c.l.b16 %v47
  %v132 = vunpack.c.l.b16 %v48
  %v133 = vunpack.c.l.b16 %v49
  %v134 = vunpack.c.l.b16 %v50
  %v135 = vunpack.c.l.b16 %v51
  %v136 = vunpack.c.l.b16 %v52
  %v137 = vunpack.c.l.b16 %v53
  %v138 = vunpack.c.l.b16 %v54
  %v139 = vunpack.c.l.b16 %v55
  %v140 = vunpack.c.l.b16 %v56
  %v141 = vpack.c.b16 %v110, %v109
  %v142 = vpack.c.b16 %v112, %v111
  %v143 = vpack.c.b16 %v114, %v113
  %v144 = vpack.c.b16 %v116, %v115
  %v145 = vpack.c.b16 %v118, %v117
  %v146 = vpack.c.b16 %v120, %v119
  %v147 = vpack.c.b16 %v122, %v121
  %v148 = vpack.c.b16 %v124, %v123
  %v149 = vpack.c.b16 %v126, %v125
  %v150 = vpack.c.b16 %v128, %v127
  %v151 = vpack.c.b16 %v130, %v129
  %v152 = vpack.c.b16 %v132, %v131
  %v153 = vpack.c.b16 %v134, %v133
  %v154 = vpack.c.b16 %v136, %v135
  %v155 = vpack.c.b16 %v138, %v137
  %v156 = vpack.c.b16 %v140, %v139
  %173 = vmatprep.subr.bf16.mxu0 0
  %174 = vmatpush1.bf16.msra.mxu0 %v141
  %175 = vmatprep.subr.bf16.mxu0 0
  %176 = vmatpush1.bf16.msra.mxu0 %v142
  %177 = vmatprep.subr.bf16.mxu0 0
  %178 = vmatpush1.bf16.msra.mxu0 %v143
  %179 = vmatprep.subr.bf16.mxu0 0
  %180 = vmatpush1.bf16.msra.mxu0 %v144
  %181 = vmatprep.subr.bf16.mxu0 0
  %182 = vmatpush1.bf16.msra.mxu0 %v145
  %183 = vmatprep.subr.bf16.mxu0 0
  %184 = vmatpush1.bf16.msra.mxu0 %v146
  %185 = vmatprep.subr.bf16.mxu0 0
  %186 = vmatpush1.bf16.msra.mxu0 %v147
  %187 = vmatprep.subr.bf16.mxu0 0
  %188 = vmatpush1.bf16.msra.mxu0 %v148
  %189 = vmatprep.subr.bf16.mxu0 0
  %190 = vmatpush1.bf16.msra.mxu0 %v149
  %191 = vmatprep.subr.bf16.mxu0 0
  %192 = vmatpush1.bf16.msra.mxu0 %v150
  %193 = vmatprep.subr.bf16.mxu0 0
  %194 = vmatpush1.bf16.msra.mxu0 %v151
  %195 = vmatprep.subr.bf16.mxu0 0
  %196 = vmatpush1.bf16.msra.mxu0 %v152
  %197 = vmatprep.subr.bf16.mxu0 0
  %198 = vmatpush1.bf16.msra.mxu0 %v153
  %199 = vmatprep.subr.bf16.mxu0 0
  %200 = vmatpush1.bf16.msra.mxu0 %v154
  %201 = vmatprep.subr.bf16.mxu0 0
  %202 = vmatpush1.bf16.msra.mxu0 %v155
  %203 = vmatprep.subr.bf16.mxu0 0
  %204 = vmatpush1.bf16.msra.mxu0 %v156
  %205 = vmatprep.mubr.bf16.mxu0 %v70
  %206 = vmatmul.mubr.bf16.gmra.mrb[0].mxu0 %v69
  %v207 = vpop.f32.mrb[0].mxu0
  %v208 = vadd.f32 0.0, %v207
  %v209 = vpop.f32.mrb[0].mxu0
  %v210 = vpop.f32.mrb[0].mxu0
  %v211 = vadd.f32 0.0, %v210
  %v212 = vpop.f32.mrb[0].mxu0
  %213 = vmatprep.mubr.bf16.mxu0 %v72
  %214 = vmatmul.mubr.bf16.gmra.mrb[0].mxu0 %v71
  %v215 = vpop.f32.mrb[0].mxu0
  %v216 = vadd.f32 0.0, %v215
  %v217 = vpop.f32.mrb[0].mxu0
  %v218 = vpop.f32.mrb[0].mxu0
  %v219 = vadd.f32 0.0, %v218
  %v220 = vpop.f32.mrb[0].mxu0
  %221 = vdwg.mxu0
  %v222 = vadd.f32 %v208, %v211
  %v223 = vadd.f32 %v222, %v216
  %v224 = vadd.f32 %v223, %v219
  %v225 = vrot.slane %v224, 4
  %v226 = vadd.f32 %v224, %v225
  %v227 = vrot.slane %v226, 2
  %v228 = vadd.f32 %v226, %v227
  %v229 = vrot.slane %v228, 1
  %v230 = vadd.f32 %v228, %v229
  %v231 = vmul.f32 %v208, %v208
  %v232 = vmul.f32 %v211, %v211
  %v233 = vmul.f32 %v216, %v216
  %v234 = vmul.f32 %v219, %v219
  %v235 = vadd.f32 %v231, %v232
  %v236 = vadd.f32 %v235, %v233
  %v237 = vadd.f32 %v236, %v234
  %v238 = vrot.slane %v237, 4
  %v239 = vadd.f32 %v237, %v238
  %v240 = vrot.slane %v239, 2
  %v241 = vadd.f32 %v239, %v240
  %v242 = vrot.slane %v241, 1
  %v243 = vadd.f32 %v241, %v242
  %vm244 = vcmask 1040384
  %v245 = vsel %vm244, %v230, %v243
  %v246 = vld [vmem:[%s2] sm:$0xff]
  %v247 = vld [vmem:[%s2 + $0x8] sm:$0xff]
  %v248 = vld [vmem:[%s2 + $0x10] sm:$0xff]
  %v249 = vld [vmem:[%s2 + $0x18] sm:$0xff]
  %v250 = vld [vmem:[%s2 + $0x20] sm:$0xff]
  %v251 = vld [vmem:[%s2 + $0x28] sm:$0xff]
  %v252 = vld [vmem:[%s2 + $0x30] sm:$0xff]
  %v253 = vld [vmem:[%s2 + $0x38] sm:$0xff]
  %v254 = vld [vmem:[%s2 + $0x40] sm:$0xff]
  %v255 = vld [vmem:[%s2 + $0x48] sm:$0xff]
  %v256 = vld [vmem:[%s2 + $0x50] sm:$0xff]
  %v257 = vld [vmem:[%s2 + $0x58] sm:$0xff]
  %v258 = vld [vmem:[%s2 + $0x60] sm:$0xff]
  %v259 = vld [vmem:[%s2 + $0x68] sm:$0xff]
  %v260 = vld [vmem:[%s2 + $0x70] sm:$0xff]
  %v261 = vld [vmem:[%s2 + $0x78] sm:$0xff]
  %262 = vmatprep.subr.mxu0 0.0
  %263 = vmatpush1.msra.mxu0 %v246
  %264 = vmatprep.subr.mxu0 0.0
  %265 = vmatpush1.msra.mxu0 %v247
  %266 = vmatprep.subr.mxu0 0.0
  %267 = vmatpush1.msra.mxu0 %v248
  %268 = vmatprep.subr.mxu0 0.0
  %269 = vmatpush1.msra.mxu0 %v249
  %270 = vmatprep.subr.mxu0 0.0
  %271 = vmatpush1.msra.mxu0 %v250
  %272 = vmatprep.subr.mxu0 0.0
  %273 = vmatpush1.msra.mxu0 %v251
  %274 = vmatprep.subr.mxu0 0.0
  %275 = vmatpush1.msra.mxu0 %v252
  %276 = vmatprep.subr.mxu0 0.0
  %277 = vmatpush1.msra.mxu0 %v253
  %278 = vmatprep.subr.mxu0 0.0
  %279 = vmatpush1.msra.mxu0 %v254
  %280 = vmatprep.subr.mxu0 0.0
  %281 = vmatpush1.msra.mxu0 %v255
  %282 = vmatprep.subr.mxu0 0.0
  %283 = vmatpush1.msra.mxu0 %v256
  %284 = vmatprep.subr.mxu0 0.0
  %285 = vmatpush1.msra.mxu0 %v257
  %286 = vmatprep.subr.mxu0 0.0
  %287 = vmatpush1.msra.mxu0 %v258
  %288 = vmatprep.subr.mxu0 0.0
  %289 = vmatpush1.msra.mxu0 %v259
  %290 = vmatprep.subr.mxu0 0.0
  %291 = vmatpush1.msra.mxu0 %v260
  %292 = vmatprep.subr.mxu0 0.0
  %293 = vmatpush1.msra.mxu0 %v261
  %294 = vmatprep.subr.mxu0 0.0
  %295 = vmatpush1.msra.mxu0 0.0
  %296 = vmatprep.subr.mxu0 0.0
  %297 = vmatpush1.msra.mxu0 0.0
  %298 = vmatprep.subr.mxu0 0.0
  %299 = vmatpush1.msra.mxu0 0.0
  %300 = vmatprep.subr.mxu0 0.0
  %301 = vmatpush1.msra.mxu0 0.0
  %302 = vmatprep.subr.mxu0 0.0
  %303 = vmatpush1.msra.mxu0 0.0
  %304 = vmatprep.subr.mxu0 0.0
  %305 = vmatpush1.msra.mxu0 0.0
  %306 = vmatprep.subr.mxu0 0.0
  %307 = vmatpush1.msra.mxu0 0.0
  %308 = vmatprep.subr.mxu0 0.0
  %309 = vmatpush1.msra.mxu0 0.0
  %310 = vmatprep.subr.mxu0 0.0
  %311 = vmatpush1.msra.mxu0 0.0
  %312 = vmatprep.subr.mxu0 0.0
  %313 = vmatpush1.msra.mxu0 0.0
  %314 = vmatprep.subr.mxu0 0.0
  %315 = vmatpush1.msra.mxu0 0.0
  %316 = vmatprep.subr.mxu0 0.0
  %317 = vmatpush1.msra.mxu0 0.0
  %318 = vmatprep.subr.mxu0 0.0
  %319 = vmatpush1.msra.mxu0 0.0
  %320 = vmatprep.subr.mxu0 0.0
  %321 = vmatpush1.msra.mxu0 0.0
  %322 = vmatprep.subr.mxu0 0.0
  %323 = vmatpush1.msra.mxu0 0.0
  %324 = vmatprep.subr.mxu0 0.0
  %325 = vmatpush1.msra.mxu0 0.0
  %326 = vmatprep.mubr.f32.mxu0 0.0
  %327 = vmatmul.mubr.f32.gmra.mrb[0].mxu0 %v245
  %v328 = vpop.f32.mrb[0].mxu0
  %v329 = vadd.f32 0.0, %v328
  %v330 = vpop.f32.mrb[0].mxu0
  %331 = vdwg.mxu0
  %v332 = vmul.f32 %v329, 0.001953125
  %v333 = vmul.f32 %v332, %v332
  %v335 = vrot.slane %v333, 7
  %v337 = vsub.f32 %v332, %v335
  %v338 = vld [vmem:[%s4] sm:$0x1]
  %v339 = vadd.f32 %v337, 1e-05
  %v340 = vrsqrt.pop %v339
  %v342 = vrot.slane %v340, 1
  %v344 = vmul.f32 %v338, %v342
  %v345 = vld [vmem:[%s4 + $0x1] sm:$0x1]
  %v346 = vmul.f32 %v332, %v344
  %v347 = vsub.f32 %v345, %v346
  %v349 = vrot.slane %v347, 7
  %v351 = vsel %vm244, %v344, %v349
  %v352 = vld [vmem:[%s3] sm:$0xff]
  %vm353 = vcmask 64512
  %v355 = vsel %vm353, %v351, 0
  %357 = vmatprep.subr.mxu0 0.0
  %358 = vmatpush1.msra.mxu0 %v352
  %359 = vmatprep.subr.mxu0 0.0
  %360 = vmatpush1.msra.mxu0 0.0
  %361 = vmatprep.subr.mxu0 0.0
  %362 = vmatpush1.msra.mxu0 0.0
  %363 = vmatprep.subr.mxu0 0.0
  %364 = vmatpush1.msra.mxu0 0.0
  %365 = vmatprep.subr.mxu0 0.0
  %366 = vmatpush1.msra.mxu0 0.0
  %367 = vmatprep.subr.mxu0 0.0
  %368 = vmatpush1.msra.mxu0 0.0
  %369 = vmatprep.subr.mxu0 0.0
  %370 = vmatpush1.msra.mxu0 0.0
  %371 = vmatprep.subr.mxu0 0.0
  %372 = vmatpush1.msra.mxu0 0.0
  %373 = vmatprep.subr.mxu0 0.0
  %374 = vmatpush1.msra.mxu0 0.0
  %375 = vmatprep.subr.mxu0 0.0
  %376 = vmatpush1.msra.mxu0 0.0
  %377 = vmatprep.subr.mxu0 0.0
  %378 = vmatpush1.msra.mxu0 0.0
  %379 = vmatprep.subr.mxu0 0.0
  %380 = vmatpush1.msra.mxu0 0.0
  %381 = vmatprep.subr.mxu0 0.0
  %382 = vmatpush1.msra.mxu0 0.0
  %383 = vmatprep.subr.mxu0 0.0
  %384 = vmatpush1.msra.mxu0 0.0
  %385 = vmatprep.subr.mxu0 0.0
  %386 = vmatpush1.msra.mxu0 0.0
  %387 = vmatprep.subr.mxu0 0.0
  %388 = vmatpush1.msra.mxu0 0.0
  %389 = vmatprep.subr.mxu0 0.0
  %390 = vmatpush1.msra.mxu0 0.0
  %391 = vmatprep.subr.mxu0 0.0
  %392 = vmatpush1.msra.mxu0 0.0
  %393 = vmatprep.subr.mxu0 0.0
  %394 = vmatpush1.msra.mxu0 0.0
  %395 = vmatprep.subr.mxu0 0.0
  %396 = vmatpush1.msra.mxu0 0.0
  %397 = vmatprep.subr.mxu0 0.0
  %398 = vmatpush1.msra.mxu0 0.0
  %399 = vmatprep.subr.mxu0 0.0
  %400 = vmatpush1.msra.mxu0 0.0
  %401 = vmatprep.subr.mxu0 0.0
  %402 = vmatpush1.msra.mxu0 0.0
  %403 = vmatprep.subr.mxu0 0.0
  %404 = vmatpush1.msra.mxu0 0.0
  %405 = vmatprep.subr.mxu0 0.0
  %406 = vmatpush1.msra.mxu0 0.0
  %407 = vmatprep.subr.mxu0 0.0
  %408 = vmatpush1.msra.mxu0 0.0
  %409 = vmatprep.subr.mxu0 0.0
  %410 = vmatpush1.msra.mxu0 0.0
  %411 = vmatprep.subr.mxu0 0.0
  %412 = vmatpush1.msra.mxu0 0.0
  %413 = vmatprep.subr.mxu0 0.0
  %414 = vmatpush1.msra.mxu0 0.0
  %415 = vmatprep.subr.mxu0 0.0
  %416 = vmatpush1.msra.mxu0 0.0
  %417 = vmatprep.subr.mxu0 0.0
  %418 = vmatpush1.msra.mxu0 0.0
  %419 = vmatprep.subr.mxu0 0.0
  %420 = vmatpush1.msra.mxu0 0.0
  %421 = vmatprep.mubr.f32.mxu0 0.0
  %422 = vmatmul.mubr.f32.gmra.mrb[0].mxu0 %v355
  %v423 = vpop.f32.mrb[0].mxu0
  %v424 = vadd.f32 0.0, %v423
  %v425 = vpop.f32.mrb[0].mxu0
  %426 = vdwg.mxu0
  %v427 = vlaneseq
  %v428 = vshrl.u32 %v427, 7
  %v429 = vsub.s32 0, %v428
  %v430 = vrot.slane %v424, %v429
  %v431 = vmul.f32 %v208, %v430
  %v432 = vmul.f32 %v211, %v430
  %v433 = vmul.f32 %v216, %v430
  %v434 = vmul.f32 %v219, %v430
  %v435 = vlaneseq
  %v436 = vshrl.u32 %v435, 7
  %v437 = vsub.s32 1, %v436
  %v438 = vrot.slane %v424, %v437
  %v439 = vadd.f32 %v431, %v438
  %v440 = vadd.f32 %v432, %v438
  %v441 = vadd.f32 %v433, %v438
  %v442 = vadd.f32 %v434, %v438
  %v443 = vmax.f32 %v439, 0.0
  %v444 = vmax.f32 %v440, 0.0
  %v445 = vmax.f32 %v441, 0.0
  %v446 = vmax.f32 %v442, 0.0
  %447 = vst [vmem:[%s5] sm:$0xff] %v443
  %448 = vst [vmem:[%s5 + $0x8] sm:$0xff] %v444
  %449 = vst [vmem:[%s5 + $0x10] sm:$0xff] %v445
  %450 = vst [vmem:[%s5 + $0x18] sm:$0xff] %v446
  // Predicated region
  $region22: #{single_conv_forward.1} parent=0 // pred_check
    _
  $region23: #{single_conv_forward.1} parent=0 // pred_check_branch
    %452 = sbr.rel (0) target = $region25
  $region24: #{single_conv_forward.1} parent=0 // pred_region
    _
  $region25: #{single_conv_forward.1} parent=0 // pred_fallthru
    _
  // Predicated region
  $region26: #{single_conv_forward.1} parent=0 // pred_check
    _
  $region27: #{single_conv_forward.1} parent=0 // pred_check_branch
    %454 = sbr.rel (0) target = $region29
  $region28: #{single_conv_forward.1} parent=0 // pred_region
    _
  $region29: #{single_conv_forward.1} parent=0 // pred_fallthru
    _

</llo_original>
